<compile_context>
chip_gen: v7x
topology: tpu7x:2x2x1
jax: 0.10.0
libtpu: 0.0.40
codegen_flags: <defaults>
</compile_context>

<pallas_src>
import numpy as np
import jax
import jax.numpy as jnp
from jax.experimental import pallas as pl
from jax.experimental.pallas import tpu as pltpu

_LANE = 128
_SUBLANE = 8


def parse_stage_config(stage_cfg):
    if isinstance(stage_cfg, int):
        return ((stage_cfg,), stage_cfg)
    elif isinstance(stage_cfg, (tuple, list)):
        return (tuple(stage_cfg), sum(stage_cfg))
    else:
        raise ValueError('Incorrect STPP config {}'.format(stage_cfg))


def _cdiv(a, b):
    return (a + b - 1) // b


def _round_up(x, m):
    return _cdiv(x, m) * m


def _equal_split(size, align, max_block):
    """Equal-split tiling.

    Returns (tile, padded_size, n_blocks) with tile % align == 0 and
    n_blocks * tile >= size.  Unlike rounding padded_size up to a multiple of
    max_block, the total zero padding is bounded by < align per tile (plus the
    initial alignment), which matters because padded zeros of W are still
    streamed from HBM and still occupy MXU passes.
    """
    size_al = _round_up(max(size, 1), align)
    n_blocks = max(1, _cdiv(size_al, _round_up(max_block, align)))
    tile = _round_up(_cdiv(size_al, n_blocks), align)
    return tile, n_blocks * tile, n_blocks


# ---------------------------------------------------------------------------
# Pallas kernel: out[i-tile] += W[i-tile, k-tile] @ X[k-tile, :]
# Grid = (N tiles [parallel], K tiles [arbitrary reduction]).
# X is a single resident VMEM block (constant block index); accumulation goes
# straight into the (resident) f32 output block -> no scratch, no final copy.
# ---------------------------------------------------------------------------
def _pool_matmul_kernel(w_ref, x_ref, o_ref):
    k = pl.program_id(1)

    @pl.when(k == 0)
    def _():
        o_ref[...] = jnp.zeros_like(o_ref)

    tk = w_ref.shape[1]
    k0 = pl.multiple_of(k * tk, _LANE)
    o_ref[...] += jnp.dot(w_ref[...], x_ref[pl.ds(k0, tk), :],
                          preferred_element_type=jnp.float32)


def pooled_matmul_padded(W_pad, X_pad, *, tn, tk, n_valid, c_valid):
    """out = (W_pad @ X_pad)[:n_valid, :c_valid] on the MXU.

    W_pad: (Np, Kp) compute-dtype (already padded on the host).
    X_pad: (Kp, Cp) compute-dtype, Cp a multiple of 128 (lane-dense).
    Returns (n_valid, c_valid) float32.
    """
    Np, Kp = W_pad.shape
    Kp2, Cp = X_pad.shape
    assert Kp == Kp2
    assert Np % tn == 0 and Kp % tk == 0 and Cp % _LANE == 0

    itemsize = np.dtype(W_pad.dtype).itemsize
    cost = pl.CostEstimate(
        flops=2 * Np * Kp * Cp,
        transcendentals=0,
        bytes_accessed=Np * Kp * itemsize + Kp * Cp * itemsize + Np * Cp * 4)

    out = pl.pallas_call(
        _pool_matmul_kernel,
        out_shape=jax.ShapeDtypeStruct((Np, Cp), jnp.float32),
        grid_spec=pltpu.PrefetchScalarGridSpec(
            num_scalar_prefetch=0,
            grid=(Np // tn, Kp // tk),
            in_specs=[
                # W streams: one (tn, tk) tile per grid step.
                pl.BlockSpec((tn, tk), lambda i, k: (i, k)),
                # X resident: constant block index -> DMA'd once, sliced along
                # K inside the kernel.
                pl.BlockSpec((Kp, Cp), lambda i, k: (0, 0)),
            ],
            out_specs=pl.BlockSpec((tn, Cp), lambda i, k: (i, 0)),
        ),
        compiler_params=pltpu.CompilerParams(
            dimension_semantics=("parallel", "arbitrary")),
        cost_estimate=cost,
    )(W_pad, X_pad)
    return out[:n_valid, :c_valid]


# ---------------------------------------------------------------------------
# Module
# ---------------------------------------------------------------------------
class STPPReorganizedPallas:

    def __init__(self, feat_dim, act_score_len, comp_score_len, reg_score_len,
                 standalong_classifier=False, with_regression=True,
                 stpp_cfg=(1, (1, 2), 1), compute_dtype=jnp.bfloat16):
        self.sc = standalong_classifier
        self.feat_dim = feat_dim
        self.act_score_len = act_score_len
        self.comp_score_len = comp_score_len
        self.reg_score_len = reg_score_len
        self.with_regression = with_regression
        self.compute_dtype = compute_dtype

        starting_parts, starting_mult = parse_stage_config(stpp_cfg[0])
        course_parts, course_mult = parse_stage_config(stpp_cfg[1])
        ending_parts, ending_mult = parse_stage_config(stpp_cfg[2])
        self.feat_multiplier = starting_mult + course_mult + ending_mult
        self.stpp_cfg = (starting_parts, course_parts, ending_parts)

        self.act_slice = slice(
            0, self.act_score_len if self.sc
            else self.act_score_len * self.feat_multiplier)
        self.comp_slice = slice(
            self.act_slice.stop,
            self.act_slice.stop + self.comp_score_len * self.feat_multiplier)
        self.reg_slice = slice(
            self.comp_slice.stop,
            self.comp_slice.stop + self.reg_score_len * self.feat_multiplier)

    def init_weights(self):
        pass

    # ------------------- host-side weight construction -------------------
    def _build_pspool_weights(self, ticks_np, scaling_np, T, n_pad, k_pad):
        """Mirror of the reference `pspool` loop, built in the (N, T, mult)
        layout so that reshape(N, T*mult) matches the contiguous reshape of
        raw[:, slice] -> (T*mult, score_len).  Returned already zero-padded to
        (n_pad, k_pad) and cast to the compute dtype (host side, so the device
        sees no extra pad/convert pass over the largest array)."""
        n = ticks_np.shape[0]
        mult = self.feat_multiplier
        K = T * mult
        assert k_pad >= K and n_pad >= n
        W = np.zeros((n, T, mult), np.float32)
        for i in range(n):
            ticks = ticks_np[i]
            scal = scaling_np[i]
            offset = 0
            for stage_idx, stage_cfg in enumerate(self.stpp_cfg):
                if stage_idx == 0:
                    s = float(scal[0])
                elif stage_idx == len(self.stpp_cfg) - 1:
                    s = float(scal[1])
                else:
                    s = 1.0
                stage_cnt = sum(stage_cfg)
                left = int(ticks[stage_idx])
                right = max(int(ticks[stage_idx]) + 1, int(ticks[stage_idx + 1]))
                if right <= 0 or left >= T:
                    offset += stage_cnt
                    continue
                for n_part in stage_cfg:
                    part_ticks = np.arange(left, right + 1e-05,
                                           (right - left) / n_part)
                    for j in range(n_part):
                        p_l = int(part_ticks[j])
                        p_r = int(part_ticks[j + 1])
                        if p_r - p_l >= 1:
                            # TODO(synk): negative p_l wraps in the torch
                            # reference (Python slicing); we clamp instead.
                            lo = max(p_l, 0)
                            hi = min(p_r, T)
                            cnt = hi - lo
                            if cnt >= 1:
                                W[i, lo:hi, offset] += s / cnt
                        offset += 1
        W_pad = np.zeros((n_pad, k_pad), dtype=self.compute_dtype)
        W_pad[:n, :K] = W.reshape(n, K)
        return W_pad

    def _build_sc_weights(self, ticks_np, T):
        n = ticks_np.shape[0]
        W = np.zeros((n, T), np.float32)
        for i in range(n):
            t1 = int(ticks_np[i, 1])
            r = max(t1 + 1, int(ticks_np[i, 2]))
            lo, hi = max(t1, 0), min(r, T)
            if hi - lo >= 1:
                W[i, lo:hi] = 1.0 / (hi - lo)
            # TODO(synk): reference yields NaN (mean of empty slice) for
            # degenerate windows; we leave zeros.
        return W

    # ------------------------------ forward ------------------------------
    def forward(self, x, proposal_ticks, scaling, *,
                max_n_block=128, max_k_block=4096):
        """x: (T, feat_dim) jnp array; proposal_ticks: (n, 4) ints (host);
        scaling: (n, 2) floats (host)."""
        assert x.shape[1] == self.feat_dim
        T = x.shape[0]
        mult = self.feat_multiplier
        ticks_np = np.asarray(proposal_ticks)
        scaling_np = np.asarray(scaling, np.float32)
        N = ticks_np.shape[0]
        K = T * mult

        def head_cols(sl, score_len):
            # Rows of x[:, sl] are laid out [offset][score]; reshaping to
            # (T*mult, score_len) is contiguous (no transpose / extra copy).
            return x[:, sl].reshape(K, score_len)

        cols, widths = [], []
        if not self.sc:
            cols.append(head_cols(self.act_slice, self.act_score_len))
            widths.append(self.act_score_len)
        cols.append(head_cols(self.comp_slice, self.comp_score_len))
        widths.append(self.comp_score_len)
        if self.with_regression:
            cols.append(head_cols(self.reg_slice, self.reg_score_len))
            widths.append(self.reg_score_len)
        C = sum(widths)

        # --- tiling plan: equal-split -> bounded zero padding --------------
        # (max_k_block=4096 keeps the double-buffered W tile + resident X well
        #  under v5e's 16 MiB default scoped VMEM even for wide C_fused;
        #  max_n_block=128 lets the "parallel" N axis split across v7x's two
        #  TensorCores once N > 128.)
        tn, Np, _ = _equal_split(N, _SUBLANE, max_n_block)
        tk, Kp, _ = _equal_split(K, _LANE, max_k_block)
        Cp = _round_up(C, _LANE)          # lane-dense X / output minor dim

        # --- W: host-built, already padded + compute dtype -----------------
        W_pad = self._build_pspool_weights(ticks_np, scaling_np, T, Np, Kp)

        # --- X: tiny; cast + pad once on device -----------------------------
        X_all = cols[0] if len(cols) == 1 else jnp.concatenate(cols, axis=1)
        X_pad = jnp.pad(X_all.astype(self.compute_dtype),
                        ((0, Kp - K), (0, Cp - C)))

        out_all = pooled_matmul_padded(W_pad, X_pad, tn=tn, tk=tk,
                                       n_valid=N, c_valid=C)

        # Un-fuse the heads (cheap column slices of a tiny (N, C) output).
        outs, c0 = [], 0
        for w in widths:
            outs.append(out_all[:, c0:c0 + w])
            c0 += w

        idx = 0
        if self.sc:
            # Tiny (N, T) @ (T, act_len): latency-dominated -> plain XLA dot
            # instead of a second Pallas launch.
            W_sc = jnp.asarray(self._build_sc_weights(ticks_np, T))
            out_act = jnp.dot(W_sc, x[:, self.act_slice],
                              precision=jax.lax.Precision.HIGHEST)
        else:
            out_act = outs[idx]
            idx += 1
        out_comp = outs[idx]
        idx += 1
        out_reg = outs[idx] if self.with_regression else None
        return out_act, out_comp, out_reg


# ---------------------------------------------------------------------------
# Pure-numpy reference (direct transcription of the PyTorch forward).
# ---------------------------------------------------------------------------
def _numpy_reference(module, x_np, ticks_np, scaling_np):
    n = ticks_np.shape[0]
    out_act = np.zeros((n, module.act_score_len), np.float32)
    out_comp = np.zeros((n, module.comp_score_len), np.float32)
    out_reg = (np.zeros((n, module.reg_score_len), np.float32)
               if module.with_regression else None)
    raw_act = x_np[:, module.act_slice]
    raw_comp = x_np[:, module.comp_slice]
    raw_reg = x_np[:, module.reg_slice] if module.with_regression else None

    def pspool(out, idx, raw, ticks, scaling, score_len, stpp_cfg):
        offset = 0
        for stage_idx, stage_cfg in enumerate(stpp_cfg):
            if stage_idx == 0:
                s = scaling[0]
            elif stage_idx == len(stpp_cfg) - 1:
                s = scaling[1]
            else:
                s = 1.0
            stage_cnt = sum(stage_cfg)
            left = ticks[stage_idx]
            right = max(ticks[stage_idx] + 1, ticks[stage_idx + 1])
            if right <= 0 or left >= raw.shape[0]:
                offset += stage_cnt
                continue
            for n_part in stage_cfg:
                part_ticks = np.arange(left, right + 1e-05,
                                       (right - left) / n_part)
                for i in range(n_part):
                    p_l = int(part_ticks[i])
                    p_r = int(part_ticks[i + 1])
                    if p_r - p_l >= 1:
                        out[idx, :] += raw[p_l:p_r,
                                           offset * score_len:(offset + 1) * score_len
                                           ].mean(axis=0) * s
                    offset += 1

    for i in range(n):
        ticks = ticks_np[i]
        if module.sc:
            out_act[i, :] = raw_act[ticks[1]:max(ticks[1] + 1, ticks[2]),
                                    :].mean(axis=0)
        else:
            pspool(out_act, i, raw_act, ticks, scaling_np[i],
                   module.act_score_len, module.stpp_cfg)
        pspool(out_comp, i, raw_comp, ticks, scaling_np[i],
               module.comp_score_len, module.stpp_cfg)
        if module.with_regression:
            pspool(out_reg, i, raw_reg, ticks, scaling_np[i],
                   module.reg_score_len, module.stpp_cfg)
    return out_act, out_comp, out_reg


if __name__ == "__main__":
    act_len, comp_len, reg_len = 5, 7, 2
    stpp_cfg = (1, (1, 2), 1)          # feat_multiplier = 5
    mult = 5
    T = 16
    n_ticks = 3

    key = jax.random.PRNGKey(0)
    k1, k2 = jax.random.split(key)

    proposal_ticks = np.array([[0, 2, 10, 14],
                               [1, 4, 8, 12],
                               [3, 5, 9, 16]], dtype=np.int32)
    scaling = np.array([[0.5, 0.7],
                        [1.0, 0.3],
                        [0.8, 1.2]], dtype=np.float32)

    # bf16 inputs / f32 accumulation -> compare with bf16-level tolerances.
    RTOL, ATOL = 2e-2, 2e-2

    # --- config 1: full pyramid pooling on all three heads -----------------
    feat_dim = (act_len + comp_len + reg_len) * mult            # 70
    mod = STPPReorganizedPallas(feat_dim, act_len, comp_len, reg_len,
                                standalong_classifier=False,
                                with_regression=True, stpp_cfg=stpp_cfg)
    x = jax.random.normal(k1, (T, feat_dim), dtype=jnp.float32)
    out_act, out_comp, out_reg = mod.forward(x, proposal_ticks, scaling)
    jax.block_until_ready((out_act, out_comp, out_reg))

    ref_act, ref_comp, ref_reg = _numpy_reference(
        mod, np.asarray(x), proposal_ticks, scaling)
    np.testing.assert_allclose(np.asarray(out_act), ref_act, rtol=RTOL, atol=ATOL)
    np.testing.assert_allclose(np.asarray(out_comp), ref_comp, rtol=RTOL, atol=ATOL)
    np.testing.assert_allclose(np.asarray(out_reg), ref_reg, rtol=RTOL, atol=ATOL)
    assert out_act.shape == (n_ticks, act_len)
    assert out_comp.shape == (n_ticks, comp_len)
    assert out_reg.shape == (n_ticks, reg_len)

    # --- config 2: standalone classifier for the activity head -------------
    feat_dim_sc = act_len + (comp_len + reg_len) * mult         # 50
    mod_sc = STPPReorganizedPallas(feat_dim_sc, act_len, comp_len, reg_len,
                                   standalong_classifier=True,
                                   with_regression=True, stpp_cfg=stpp_cfg)
    x_sc = jax.random.normal(k2, (T, feat_dim_sc), dtype=jnp.float32)
    out_act2, out_comp2, out_reg2 = mod_sc.forward(x_sc, proposal_ticks, scaling)
    jax.block_until_ready((out_act2, out_comp2, out_reg2))

    ref_act2, ref_comp2, ref_reg2 = _numpy_reference(
        mod_sc, np.asarray(x_sc), proposal_ticks, scaling)
    np.testing.assert_allclose(np.asarray(out_act2), ref_act2, rtol=RTOL, atol=ATOL)
    np.testing.assert_allclose(np.asarray(out_comp2), ref_comp2, rtol=RTOL, atol=ATOL)
    np.testing.assert_allclose(np.asarray(out_reg2), ref_reg2, rtol=RTOL, atol=ATOL)
    assert out_act2.shape == (n_ticks, act_len)
    assert out_comp2.shape == (n_ticks, comp_len)
    assert out_reg2.shape == (n_ticks, reg_len)

    print("KERNEL_OK")
</pallas_src>

<mosaic_0001>
module attributes {stable_mosaic.version = 11 : i64} {
  func.func @_pool_matmul_kernel(%arg0: i32, %arg1: i32, %arg2: memref<8x128xbf16, #tpu.memory_space<vmem>>, %arg3: memref<128x128xbf16, #tpu.memory_space<vmem>>, %arg4: memref<8x128xf32, #tpu.memory_space<vmem>>) attributes {dimension_semantics = [#tpu.dimension_semantics<parallel>, #tpu.dimension_semantics<arbitrary>], iteration_bounds = array<i64: 1, 1>, scalar_prefetch = 0 : i64, scratch_operands = 0 : i64, tpu.core_type = #tpu.core_type<tc>, window_params = [{transform_indices = @transform_0, window_bounds = array<i64: 8, 128>}, {pipeline_mode = #tpu.pipeline_mode<synchronous>, transform_indices = @transform_1, window_bounds = array<i64: 128, 128>}, {transform_indices = @transform_2, window_bounds = array<i64: 8, 128>}]} {
    %c0_i32 = arith.constant 0 : i32
    %0 = arith.cmpi eq, %arg1, %c0_i32 : i32
    %1 = arith.extui %0 : i1 to i32
    %c0_i32_0 = arith.constant 0 : i32
    %2 = arith.cmpi ne, %1, %c0_i32_0 : i32
    scf.if %2 {
      %cst_7 = arith.constant 0.000000e+00 : f32
      %12 = vector.broadcast %cst_7 : f32 to vector<8x128xf32>
      %c0_8 = arith.constant 0 : index
      %c0_9 = arith.constant 0 : index
      %13 = vector.load %arg4[%c0_8, %c0_9] : memref<8x128xf32, #tpu.memory_space<vmem>>, vector<8x128xf32>
      tpu.vector_store %arg4[%c0_8, %c0_9], %12 {strides = array<i32>} : memref<8x128xf32, #tpu.memory_space<vmem>>, vector<8x128xf32>,
    } else {
    }
    %c128_i32 = arith.constant 128 : i32
    %3 = arith.muli %arg1, %c128_i32 : i32
    %4 = tpu.assume_multiple %3, 128 : i32
    %c0 = arith.constant 0 : index
    %c0_1 = arith.constant 0 : index
    %5 = vector.load %arg4[%c0, %c0_1] : memref<8x128xf32, #tpu.memory_space<vmem>>, vector<8x128xf32>
    %c0_2 = arith.constant 0 : index
    %c0_3 = arith.constant 0 : index
    %6 = vector.load %arg2[%c0_2, %c0_3] : memref<8x128xbf16, #tpu.memory_space<vmem>>, vector<8x128xbf16>
    %7 = arith.index_cast %4 : i32 to index
    %c0_4 = arith.constant 0 : index
    %8 = vector.load %arg3[%7, %c0_4] : memref<128x128xbf16, #tpu.memory_space<vmem>>, vector<128x128xbf16>
    %cst = arith.constant dense<0.000000e+00> : vector<8x128xf32>
    %9 = tpu.matmul %6, %8, %cst {dimension_numbers = #tpu.dot_dimension_numbers<[1], [0], [0], [1], [0, 0, 1, 1], [], []>} : vector<8x128xbf16>, vector<128x128xbf16>, vector<8x128xf32> -> vector<8x128xf32>
    %10 = arith.addf %5, %9 : vector<8x128xf32>
    %c0_5 = arith.constant 0 : index
    %c0_6 = arith.constant 0 : index
    %11 = vector.load %arg4[%c0_5, %c0_6] : memref<8x128xf32, #tpu.memory_space<vmem>>, vector<8x128xf32>
    tpu.vector_store %arg4[%c0_5, %c0_6], %10 {strides = array<i32>} : memref<8x128xf32, #tpu.memory_space<vmem>>, vector<8x128xf32>,
    return
  }
  func.func @transform_0(%arg0: i32, %arg1: i32) -> (i32, i32) {
    %c0_i32 = arith.constant 0 : i32
    return %arg0, %arg1 : i32, i32
  }
  func.func @transform_1(%arg0: i32, %arg1: i32) -> (i32, i32) {
    %c0_i32 = arith.constant 0 : i32
    %c0_i32_0 = arith.constant 0 : i32
    %c0_i32_1 = arith.constant 0 : i32
    return %c0_i32, %c0_i32_0 : i32, i32
  }
  func.func @transform_2(%arg0: i32, %arg1: i32) -> (i32, i32) {
    %c0_i32 = arith.constant 0 : i32
    %c0_i32_0 = arith.constant 0 : i32
    return %arg0, %c0_i32 : i32, i32
  }
}

</mosaic_0001>

<llo_original>
// kernel: tpu_custom_call.1
$region0: #{tpu_custom_call.1}
  #allocation0 [shape = 'u32[]', space=smem, size = 0x4, offset = 0x4, fixed_abs, tag = 'smem constant byte address 0x4 - core index']
  #allocation1 [shape = 'u32[144,128]{1,0:T(1,128)}', space=vmem, size = 0x12000, scoped, tag = 'internal scratch']
  %s0 = inlined_call_operand.hbm [shape: bf16[8,128], index: 0, kind: input, shape index: {}]
  %s1 = inlined_call_operand.hbm [shape: bf16[128,128], index: 1, kind: input, shape index: {}]
  %s2 = inlined_call_operand.hbm [shape: f32[8,128], index: 2, kind: output, shape index: {}]
  %s3 = sld [smem:[#allocation0]]
  $region30: #{tpu_custom_call.1} parent=0
    _
  %s5 = ssub.s32 1, %s3
  %s6 = scalar_select 0, %s5, %s3
  $region1: #{tpu_custom_call.1} parent=0
    #allocation2 [shape = 'u8[2048]{0}', space=vmem, size = 0x800, scoped, tag = 'input window, operand 0, single buffered']
    #allocation3 [shape = 's32[1]{0}', space=sflag, size = 0x4, scoped, tag = 'scoped memory for tpu_custom_call.1']
    #allocation4 [shape = 's32[1]{0}', space=sflag, size = 0x4, scoped, tag = 'scoped memory for tpu_custom_call.1']
    #allocation5 [shape = 'u8[32768]{0}', space=vmem, size = 0x8000, scoped, tag = 'input window, operand 1, single buffered']
    #allocation6 [shape = 's32[1]{0}', space=sflag, size = 0x4, scoped, tag = 'scoped memory for tpu_custom_call.1']
    #allocation7 [shape = 'u8[4096]{0}', space=vmem, size = 0x1000, scoped, tag = 'output window, operand 0, single buffered']
    %7 = vsyncpa [#allocation3], 0
    %8 = vsyncpa [#allocation6], 0
    %9 = vsyncpa [#allocation4], 0
    // Predicated region
    $region2: #{tpu_custom_call.1} parent=1 // pred_check
      _
    $region3: #{tpu_custom_call.1} parent=1 // pred_check_branch
      %11 = sbr.rel (0) target = $region5
    $region4: #{tpu_custom_call.1} parent=1 // pred_region
      %s13 = ssub.s32 64, 64
      %14 = vsyncadd [#allocation3], %s13
      %s16 = sshll.u32 [#allocation2], 4
      %s17 = int_to_ptr.vmem [resolvable:$true] %s16
      %19 = dma.hbm_to_vmem [thread:$0]  %s0, 64, %s17, [#allocation3]
    $region5: #{tpu_custom_call.1} parent=1 // pred_fallthru
      _
    // Predicated region
    $region6: #{tpu_custom_call.1} parent=1 // pred_check
      _
    $region7: #{tpu_custom_call.1} parent=1 // pred_check_branch
      %21 = sbr.rel (0) target = $region9
    $region8: #{tpu_custom_call.1} parent=1 // pred_region
      %s23 = ssub.s32 1024, 1024
      %24 = vsyncadd [#allocation6], %s23
      %s25 = sshll.u32 [#allocation5], 4
      %s26 = int_to_ptr.vmem [resolvable:$true] %s25
      %31 = dma.hbm_to_vmem [thread:$0]  %s1, 1024, %s26, [#allocation6], 64, 64, 4
    $region9: #{tpu_custom_call.1} parent=1 // pred_fallthru
      _
    // Predicated region
    $region10: #{tpu_custom_call.1} parent=1 // pred_check
      _
    $region11: #{tpu_custom_call.1} parent=1 // pred_check_branch
      %33 = sbr.rel (0) target = $region13
    $region12: #{tpu_custom_call.1} parent=1 // pred_region
      %34 = dma.done [#allocation3], 64
    $region13: #{tpu_custom_call.1} parent=1 // pred_fallthru
      _
    // Predicated region
    $region14: #{tpu_custom_call.1} parent=1 // pred_check
      _
    $region15: #{tpu_custom_call.1} parent=1 // pred_check_branch
      %36 = sbr.rel (0) target = $region17
    $region16: #{tpu_custom_call.1} parent=1 // pred_region
      %37 = dma.done [#allocation6], 1024
    $region17: #{tpu_custom_call.1} parent=1 // pred_fallthru
      _
    %p39 = scmp.eq.s32.totalorder 0, 0
    // Predicated region
    $region18: #{tpu_custom_call.1} parent=1 // pred_check
      %p40 = pneg %p39
    $region19: #{tpu_custom_call.1} parent=1 // pred_check_branch
      %42 = sbr.rel (%p40) target = $region21
    $region20: #{tpu_custom_call.1} parent=1 // pred_region
      %43 = vst [vmem:[#allocation7] sm:$0xff] 0.0
    $region21: #{tpu_custom_call.1} parent=1 // pred_fallthru
      _
    %s44 = smul.u32 0, 128
    %v45 = vld [vmem:[#allocation7] sm:$0xff]
    %v46 = vld [vmem:[#allocation2] sm:$0xf]
    %s47 = sshra.s32 %s44, 3
    %s48 = sand.u32 %s44, 7
    %s49 = smul.addr %s47, 4
    %s50 = scalar_lea.vmem [#allocation5], %s49
    %v51 = vld [vmem:[%s50] sm:$0xf]
    %v52 = vld [vmem:[%s50 + $0x4] sm:$0xf]
    %v53 = vld [vmem:[%s50 + $0x8] sm:$0xf]
    %v54 = vld [vmem:[%s50 + $0xc] sm:$0xf]
    %v55 = vld [vmem:[%s50 + $0x10] sm:$0xf]
    %v56 = vld [vmem:[%s50 + $0x14] sm:$0xf]
    %v57 = vld [vmem:[%s50 + $0x18] sm:$0xf]
    %v58 = vld [vmem:[%s50 + $0x1c] sm:$0xf]
    %v59 = vld [vmem:[%s50 + $0x20] sm:$0xf]
    %v60 = vld [vmem:[%s50 + $0x24] sm:$0xf]
    %v61 = vld [vmem:[%s50 + $0x28] sm:$0xf]
    %v62 = vld [vmem:[%s50 + $0x2c] sm:$0xf]
    %v63 = vld [vmem:[%s50 + $0x30] sm:$0xf]
    %v64 = vld [vmem:[%s50 + $0x34] sm:$0xf]
    %v65 = vld [vmem:[%s50 + $0x38] sm:$0xf]
    %v66 = vld [vmem:[%s50 + $0x3c] sm:$0xf]
    %v83 = vunpack.c.l.b16 %v51
    %v84 = vunpack.c.l.b16 %v52
    %v85 = vunpack.c.l.b16 %v53
    %v86 = vunpack.c.l.b16 %v54
    %v87 = vunpack.c.l.b16 %v55
    %v88 = vunpack.c.l.b16 %v56
    %v89 = vunpack.c.l.b16 %v57
    %v90 = vunpack.c.l.b16 %v58
    %v91 = vunpack.c.l.b16 %v59
    %v92 = vunpack.c.l.b16 %v60
    %v93 = vunpack.c.l.b16 %v61
    %v94 = vunpack.c.l.b16 %v62
    %v95 = vunpack.c.l.b16 %v63
    %v96 = vunpack.c.l.b16 %v64
    %v97 = vunpack.c.l.b16 %v65
    %v98 = vunpack.c.l.b16 %v66
    %v99 = vpack.c.b16 %v84, %v83
    %v100 = vpack.c.b16 %v86, %v85
    %v101 = vpack.c.b16 %v88, %v87
    %v102 = vpack.c.b16 %v90, %v89
    %v103 = vpack.c.b16 %v92, %v91
    %v104 = vpack.c.b16 %v94, %v93
    %v105 = vpack.c.b16 %v96, %v95
    %v106 = vpack.c.b16 %v98, %v97
    %115 = vmatprep.subr.bf16.mxu0 0
    %116 = vmatpush1.bf16.msra.mxu0 %v99
    %117 = vmatprep.subr.bf16.mxu0 0
    %118 = vmatpush1.bf16.msra.mxu0 %v100
    %119 = vmatprep.subr.bf16.mxu0 0
    %120 = vmatpush1.bf16.msra.mxu0 %v101
    %121 = vmatprep.subr.bf16.mxu0 0
    %122 = vmatpush1.bf16.msra.mxu0 %v102
    %123 = vmatprep.subr.bf16.mxu0 0
    %124 = vmatpush1.bf16.msra.mxu0 %v103
    %125 = vmatprep.subr.bf16.mxu0 0
    %126 = vmatpush1.bf16.msra.mxu0 %v104
    %127 = vmatprep.subr.bf16.mxu0 0
    %128 = vmatpush1.bf16.msra.mxu0 %v105
    %129 = vmatprep.subr.bf16.mxu0 0
    %130 = vmatpush1.bf16.msra.mxu0 %v106
    %131 = vmatprep.subr.bf16.mxu0 0
    %132 = vmatpush1.bf16.msra.mxu0 0
    %133 = vmatprep.subr.bf16.mxu0 0
    %134 = vmatpush1.bf16.msra.mxu0 0
    %135 = vmatprep.subr.bf16.mxu0 0
    %136 = vmatpush1.bf16.msra.mxu0 0
    %137 = vmatprep.subr.bf16.mxu0 0
    %138 = vmatpush1.bf16.msra.mxu0 0
    %139 = vmatprep.subr.bf16.mxu0 0
    %140 = vmatpush1.bf16.msra.mxu0 0
    %141 = vmatprep.subr.bf16.mxu0 0
    %142 = vmatpush1.bf16.msra.mxu0 0
    %143 = vmatprep.subr.bf16.mxu0 0
    %144 = vmatpush1.bf16.msra.mxu0 0
    %145 = vmatprep.subr.bf16.mxu0 0
    %146 = vmatpush1.bf16.msra.mxu0 0
    %147 = vmatprep.mubr.bf16.mxu0 0
    %148 = vmatmul.mubr.bf16.gmra.mrb[0].mxu0 %v46
    %v149 = vpop.f32.mrb[0].mxu0
    %v150 = vadd.f32 0.0, %v149
    %v151 = vpop.f32.mrb[0].mxu0
    %v152 = vpop.f32.mrb[0].mxu0
    %v153 = vpop.f32.mrb[0].mxu0
    %154 = vdwg.mxu0
    %v155 = vadd.f32 %v45, %v150
    %156 = vst [vmem:[#allocation7] sm:$0xff] %v155
    // Predicated region
    $region22: #{tpu_custom_call.1} parent=1 // pred_check
      _
    $region23: #{tpu_custom_call.1} parent=1 // pred_check_branch
      %158 = sbr.rel (0) target = $region25
    $region24: #{tpu_custom_call.1} parent=1 // pred_region
      %s160 = ssub.s32 128, 128
      %161 = vsyncadd [#allocation4], %s160
      %s163 = sshll.u32 [#allocation7], 4
      %s164 = int_to_ptr.vmem [resolvable:$true] %s163
      %166 = dma.vmem_to_hbm [thread:$0]  %s164, 128, %s2, [#allocation4]
    $region25: #{tpu_custom_call.1} parent=1 // pred_fallthru
      _
    // Predicated region
    $region26: #{tpu_custom_call.1} parent=1 // pred_check
      _
    $region27: #{tpu_custom_call.1} parent=1 // pred_check_branch
      %168 = sbr.rel (0) target = $region29
    $region28: #{tpu_custom_call.1} parent=1 // pred_region
      %169 = dma.done [#allocation4], 128
    $region29: #{tpu_custom_call.1} parent=1 // pred_fallthru
      _
    %170 = vsyncpa [#allocation3], 1
    %171 = vsyncpa [#allocation6], 1
    %172 = vsyncpa [#allocation4], 1

</llo_original>
